<compile_context>
chip_gen: v7x
topology: tpu7x:2x2x1
jax: 0.10.0
libtpu: 0.0.40
codegen_flags: <defaults>
</compile_context>

<pallas_src>
import jax
import jax.numpy as jnp
from jax.experimental import pallas as pl
from jax.experimental.pallas import tpu as pltpu


# ----------------------------- Pallas kernel ------------------------------- #

def fused_residual_kernel(x_ref, w1_ref, b1_ref, w2_ref, ws_ref, b2_ref, o_ref,
                          xpad_s, rpad_s):
    """Fused residual block for one image, grid = (N,).

    x_ref  : (1, H, W*Cin)        lane-dense input image
    w1_ref : (3, W*Cin,  W*Cout)  conv1 * bn1-scale, banded per ky
    b1_ref : (1, W*Cout)          bn1 bias tiled across W (f32)
    w2_ref : (3, W*Cout, W*Cout)  conv2 * bn2-scale, banded per ky
    ws_ref : (W*Cin,  W*Cout)     1x1 skip * bns-scale, block-diagonal
    b2_ref : (1, W*Cout)          bn2 bias + bns bias, tiled (f32)
    o_ref  : (1, H, W*Cout)       lane-dense output
    xpad_s : VMEM (H+2, W*Cin)    height-padded input scratch
    rpad_s : VMEM (H+2, W*Cout)   height-padded relu1 scratch (no HBM round-trip)
    """
    H = x_ref.shape[1]

    # --- height-pad x into VMEM (zero the two border rows only; interior = 1 dense store) ---
    xpad_s[0:1, :] = jnp.zeros((1, xpad_s.shape[1]), xpad_s.dtype)
    xpad_s[H + 1:H + 2, :] = jnp.zeros((1, xpad_s.shape[1]), xpad_s.dtype)
    xpad_s[1:H + 1, :] = x_ref[0]

    # --- stage 1: conv1 as 3 banded matmuls (f32 acc) + folded-BN1 bias + ReLU ---
    acc1 = jnp.dot(xpad_s[0:H, :], w1_ref[0], preferred_element_type=jnp.float32)
    acc1 += jnp.dot(xpad_s[1:H + 1, :], w1_ref[1], preferred_element_type=jnp.float32)
    acc1 += jnp.dot(xpad_s[2:H + 2, :], w1_ref[2], preferred_element_type=jnp.float32)
    relu1 = jnp.maximum(acc1 + b1_ref[...], 0.0)

    # --- height-pad relu1 (bf16 path rounds relu1 here; covered by loose tolerance) ---
    rpad_s[0:1, :] = jnp.zeros((1, rpad_s.shape[1]), rpad_s.dtype)
    rpad_s[H + 1:H + 2, :] = jnp.zeros((1, rpad_s.shape[1]), rpad_s.dtype)
    rpad_s[1:H + 1, :] = relu1.astype(rpad_s.dtype)

    # --- stage 2: conv2 (3 banded matmuls) + 1x1 skip matmul + biases + add + ReLU ---
    acc2 = jnp.dot(rpad_s[0:H, :], w2_ref[0], preferred_element_type=jnp.float32)
    acc2 += jnp.dot(rpad_s[1:H + 1, :], w2_ref[1], preferred_element_type=jnp.float32)
    acc2 += jnp.dot(rpad_s[2:H + 2, :], w2_ref[2], preferred_element_type=jnp.float32)
    acc2 += jnp.dot(x_ref[0], ws_ref[...], preferred_element_type=jnp.float32)
    o_ref[0] = jnp.maximum(acc2 + b2_ref[...], 0.0).astype(o_ref.dtype)


# ------------------------------- wrapper ----------------------------------- #

def _fold_bn(gamma, beta, mean, var, eps=1e-5):
    scale = gamma / jnp.sqrt(var + eps)
    bias = beta - mean * scale
    return scale.astype(jnp.float32), bias.astype(jnp.float32)


def _conv3x3_bands(w_hwio, scale, W, dtype):
    """(3,3,Ci,Co) HWIO weights * per-Co scale -> (3, W*Ci, W*Co) banded matrices.

    band[ky][iw*Ci + ci, ow*Co + co] = w[ky, kx, ci, co] * scale[co] with iw = ow + kx - 1;
    out-of-range iw rows are simply absent, which implements zero width-padding by omission.
    """
    w = (w_hwio * scale).astype(jnp.float32)                       # (3, 3, Ci, Co)
    _, _, Ci, Co = w.shape
    iw = jnp.arange(W)[:, None, None]
    ow = jnp.arange(W)[None, :, None]
    kx = jnp.arange(3)[None, None, :]
    ind = (iw == ow + kx - 1).astype(jnp.float32)                  # (W, W, 3)
    band = jnp.einsum('iok,ykcd->yicod', ind, w)                   # (3, W, Ci, W, Co)
    return band.reshape(3, W * Ci, W * Co).astype(dtype)


def _conv1x1_band(w_io, scale, W, dtype):
    """(Ci,Co) 1x1 weights * per-Co scale -> block-diagonal (W*Ci, W*Co)."""
    w = (w_io * scale).astype(jnp.float32)
    Ci, Co = w.shape
    band = jnp.einsum('io,cd->icod', jnp.eye(W, dtype=jnp.float32), w)   # (W, Ci, W, Co)
    return band.reshape(W * Ci, W * Co).astype(dtype)


def residual_forward(x_nchw, params, *, compute_dtype=jnp.float32):
    """Forward pass of the `residual` module. Input/output are NCHW like PyTorch.

    compute_dtype=jnp.bfloat16: bf16 MXU operands + bf16 HBM output, f32 accumulation.
    """
    N, Cin, H, W = x_nchw.shape
    Cout = params["w1"].shape[-1]
    WCin, WCout = W * Cin, W * Cout
    # TODO(synk): for non-demo shapes pick W*Cout a multiple of 128 (pad Cout or split W along
    #             the grid) to keep unmasked lane-dense stores; the demo has W*Cout == 128.

    x = jnp.transpose(x_nchw, (0, 2, 3, 1)).reshape(N, H, WCin).astype(compute_dtype)

    s1, b1 = _fold_bn(*params["bn1"])
    s2, b2 = _fold_bn(*params["bn2"])
    ss, bs = _fold_bn(*params["bns"])

    w1b = _conv3x3_bands(params["w1"], s1, W, compute_dtype)       # (3, W*Cin,  W*Cout)
    w2b = _conv3x3_bands(params["w2"], s2, W, compute_dtype)       # (3, W*Cout, W*Cout)
    wsb = _conv1x1_band(params["ws"], ss, W, compute_dtype)        # (W*Cin, W*Cout)
    b1v = jnp.tile(b1, W).reshape(1, WCout)                        # f32 epilogue biases
    b2v = jnp.tile(b2 + bs, W).reshape(1, WCout)

    out_flat = pl.pallas_call(
        fused_residual_kernel,
        out_shape=jax.ShapeDtypeStruct((N, H, WCout), compute_dtype),
        grid=(N,),
        in_specs=[
            pl.BlockSpec((1, H, WCin), lambda n: (n, 0, 0)),       # lane-dense image
            pl.BlockSpec((3, WCin, WCout), lambda n: (0, 0, 0)),   # weights resident
            pl.BlockSpec((1, WCout), lambda n: (0, 0)),
            pl.BlockSpec((3, WCout, WCout), lambda n: (0, 0, 0)),
            pl.BlockSpec((WCin, WCout), lambda n: (0, 0)),
            pl.BlockSpec((1, WCout), lambda n: (0, 0)),
        ],
        out_specs=pl.BlockSpec((1, H, WCout), lambda n: (n, 0, 0)),    # lane-dense store
        scratch_shapes=[
            pltpu.VMEM((H + 2, WCin), compute_dtype),
            pltpu.VMEM((H + 2, WCout), compute_dtype),
        ],
        compiler_params=pltpu.CompilerParams(
            dimension_semantics=("parallel",),                     # batch axis -> both TCs on v7x
        ),
    )(x, w1b, b1v, w2b, wsb, b2v)

    out = out_flat.reshape(N, H, W, Cout).astype(jnp.float32)
    return jnp.transpose(out, (0, 3, 1, 2))                        # back to NCHW


# --------------------------- pure-JAX reference ----------------------------- #

def residual_reference(x_nchw, params):
    x = jnp.transpose(x_nchw, (0, 2, 3, 1)).astype(jnp.float32)

    def conv(v, w):
        return jax.lax.conv_general_dilated(
            v, w, window_strides=(1, 1), padding="SAME",
            dimension_numbers=("NHWC", "HWIO", "NHWC"))

    def bn(v, p, eps=1e-5):
        gamma, beta, mean, var = p
        return (v - mean) / jnp.sqrt(var + eps) * gamma + beta

    y = jax.nn.relu(bn(conv(x, params["w1"]), params["bn1"]))
    y = bn(conv(y, params["w2"]), params["bn2"])
    skip = bn(conv(x, params["ws"][None, None, :, :]), params["bns"])
    out = jax.nn.relu(y + skip)
    return jnp.transpose(out, (0, 3, 1, 2))


# --------------------------------- main ------------------------------------ #

def make_params(key, cin, cout):
    ks = jax.random.split(key, 16)

    def bn_params(k, c):
        k0, k1, k2, k3 = jax.random.split(k, 4)
        gamma = 1.0 + 0.1 * jax.random.normal(k0, (c,), jnp.float32)
        beta = 0.1 * jax.random.normal(k1, (c,), jnp.float32)
        mean = 0.1 * jax.random.normal(k2, (c,), jnp.float32)
        var = jax.random.uniform(k3, (c,), jnp.float32, 0.5, 1.5)
        return (gamma, beta, mean, var)

    return {
        "w1": 0.1 * jax.random.normal(ks[0], (3, 3, cin, cout), jnp.float32),   # HWIO
        "w2": 0.1 * jax.random.normal(ks[1], (3, 3, cout, cout), jnp.float32),  # HWIO
        "ws": 0.1 * jax.random.normal(ks[2], (cin, cout), jnp.float32),         # 1x1 skip conv
        "bn1": bn_params(ks[3], cout),
        "bn2": bn_params(ks[4], cout),
        "bns": bn_params(ks[5], cout),
    }


if __name__ == "__main__":
    N, Cin, Cout, H, W = 2, 4, 8, 16, 16

    key = jax.random.PRNGKey(0)
    kx, kp = jax.random.split(key)
    x = jax.random.normal(kx, (N, Cin, H, W), jnp.float32)   # NCHW, like the PyTorch module
    params = make_params(kp, Cin, Cout)

    ref = residual_reference(x, params)

    # f32 path.
    out = jax.block_until_ready(residual_forward(x, params))
    assert out.shape == (N, Cout, H, W)
    assert jnp.allclose(out, ref, atol=2e-3, rtol=2e-3), (
        f"f32 max abs err = {jnp.max(jnp.abs(out - ref))}")

    # bf16 MXU path (v5e bandwidth / v6e+v7x bf16 units): bf16 operands + bf16 output,
    # f32 accumulation; looser tolerance (inputs, weights, relu1 and output rounded to bf16).
    out_bf16 = jax.block_until_ready(
        residual_forward(x, params, compute_dtype=jnp.bfloat16))
    assert jnp.allclose(out_bf16, ref, atol=6e-2, rtol=6e-2), (
        f"bf16 max abs err = {jnp.max(jnp.abs(out_bf16 - ref))}")

    print("KERNEL_OK")
</pallas_src>

<mosaic_0001>
module attributes {stable_mosaic.version = 11 : i64} {
  func.func @fused_residual_kernel(%arg0: i32, %arg1: memref<1x16x64xf32, #tpu.memory_space<vmem>>, %arg2: memref<3x64x128xf32, #tpu.memory_space<vmem>>, %arg3: memref<1x128xf32, #tpu.memory_space<vmem>>, %arg4: memref<3x128x128xf32, #tpu.memory_space<vmem>>, %arg5: memref<64x128xf32, #tpu.memory_space<vmem>>, %arg6: memref<1x128xf32, #tpu.memory_space<vmem>>, %arg7: memref<1x16x128xf32, #tpu.memory_space<vmem>>, %arg8: memref<18x64xf32, #tpu.memory_space<vmem>>, %arg9: memref<18x128xf32, #tpu.memory_space<vmem>>) attributes {dimension_semantics = [#tpu.dimension_semantics<parallel>], iteration_bounds = array<i64: 2>, scalar_prefetch = 0 : i64, scratch_operands = 2 : i64, tpu.core_type = #tpu.core_type<tc>, window_params = [{transform_indices = @transform_0, window_bounds = array<i64: 1, 16, 64>}, {pipeline_mode = #tpu.pipeline_mode<synchronous>, transform_indices = @transform_1, window_bounds = array<i64: 3, 64, 128>}, {pipeline_mode = #tpu.pipeline_mode<synchronous>, transform_indices = @transform_2, window_bounds = array<i64: 1, 128>}, {pipeline_mode = #tpu.pipeline_mode<synchronous>, transform_indices = @transform_3, window_bounds = array<i64: 3, 128, 128>}, {pipeline_mode = #tpu.pipeline_mode<synchronous>, transform_indices = @transform_4, window_bounds = array<i64: 64, 128>}, {pipeline_mode = #tpu.pipeline_mode<synchronous>, transform_indices = @transform_5, window_bounds = array<i64: 1, 128>}, {transform_indices = @transform_6, window_bounds = array<i64: 1, 16, 128>}]} {
    %cst = arith.constant 0.000000e+00 : f32
    %0 = vector.broadcast %cst : f32 to vector<1x64xf32>
    %c0 = arith.constant 0 : index
    %c0_0 = arith.constant 0 : index
    %1 = vector.load %arg8[%c0, %c0_0] : memref<18x64xf32, #tpu.memory_space<vmem>>, vector<1x64xf32>
    tpu.vector_store %arg8[%c0, %c0_0], %0 {strides = array<i32>} : memref<18x64xf32, #tpu.memory_space<vmem>>, vector<1x64xf32>,
    %cst_1 = arith.constant 0.000000e+00 : f32
    %2 = vector.broadcast %cst_1 : f32 to vector<1x64xf32>
    %c17 = arith.constant 17 : index
    %c0_2 = arith.constant 0 : index
    %3 = vector.load %arg8[%c17, %c0_2] : memref<18x64xf32, #tpu.memory_space<vmem>>, vector<1x64xf32>
    tpu.vector_store %arg8[%c17, %c0_2], %2 {strides = array<i32>} : memref<18x64xf32, #tpu.memory_space<vmem>>, vector<1x64xf32>,
    %c0_3 = arith.constant 0 : index
    %c0_4 = arith.constant 0 : index
    %c0_5 = arith.constant 0 : index
    %4 = vector.load %arg1[%c0_3, %c0_4, %c0_5] : memref<1x16x64xf32, #tpu.memory_space<vmem>>, vector<1x16x64xf32>
    %5 = vector.shape_cast %4 : vector<1x16x64xf32> to vector<16x64xf32>
    %c1 = arith.constant 1 : index
    %c0_6 = arith.constant 0 : index
    %6 = vector.load %arg8[%c1, %c0_6] : memref<18x64xf32, #tpu.memory_space<vmem>>, vector<16x64xf32>
    tpu.vector_store %arg8[%c1, %c0_6], %5 {strides = array<i32>} : memref<18x64xf32, #tpu.memory_space<vmem>>, vector<16x64xf32>,
    %c0_7 = arith.constant 0 : index
    %c0_8 = arith.constant 0 : index
    %7 = vector.load %arg8[%c0_7, %c0_8] : memref<18x64xf32, #tpu.memory_space<vmem>>, vector<16x64xf32>
    %c0_9 = arith.constant 0 : index
    %c0_10 = arith.constant 0 : index
    %c0_11 = arith.constant 0 : index
    %8 = vector.load %arg2[%c0_9, %c0_10, %c0_11] : memref<3x64x128xf32, #tpu.memory_space<vmem>>, vector<1x64x128xf32>
    %9 = vector.shape_cast %8 : vector<1x64x128xf32> to vector<64x128xf32>
    %cst_12 = arith.constant dense<0.000000e+00> : vector<16x128xf32>
    %10 = tpu.matmul %7, %9, %cst_12 {dimension_numbers = #tpu.dot_dimension_numbers<[1], [0], [0], [1], [0, 0, 1, 1], [], []>} : vector<16x64xf32>, vector<64x128xf32>, vector<16x128xf32> -> vector<16x128xf32>
    %c1_13 = arith.constant 1 : index
    %c0_14 = arith.constant 0 : index
    %11 = vector.load %arg8[%c1_13, %c0_14] : memref<18x64xf32, #tpu.memory_space<vmem>>, vector<16x64xf32>
    %c1_15 = arith.constant 1 : index
    %c0_16 = arith.constant 0 : index
    %c0_17 = arith.constant 0 : index
    %12 = vector.load %arg2[%c1_15, %c0_16, %c0_17] : memref<3x64x128xf32, #tpu.memory_space<vmem>>, vector<1x64x128xf32>
    %13 = vector.shape_cast %12 : vector<1x64x128xf32> to vector<64x128xf32>
    %cst_18 = arith.constant dense<0.000000e+00> : vector<16x128xf32>
    %14 = tpu.matmul %11, %13, %cst_18 {dimension_numbers = #tpu.dot_dimension_numbers<[1], [0], [0], [1], [0, 0, 1, 1], [], []>} : vector<16x64xf32>, vector<64x128xf32>, vector<16x128xf32> -> vector<16x128xf32>
    %15 = arith.addf %10, %14 : vector<16x128xf32>
    %c2 = arith.constant 2 : index
    %c0_19 = arith.constant 0 : index
    %16 = vector.load %arg8[%c2, %c0_19] : memref<18x64xf32, #tpu.memory_space<vmem>>, vector<16x64xf32>
    %c2_20 = arith.constant 2 : index
    %c0_21 = arith.constant 0 : index
    %c0_22 = arith.constant 0 : index
    %17 = vector.load %arg2[%c2_20, %c0_21, %c0_22] : memref<3x64x128xf32, #tpu.memory_space<vmem>>, vector<1x64x128xf32>
    %18 = vector.shape_cast %17 : vector<1x64x128xf32> to vector<64x128xf32>
    %cst_23 = arith.constant dense<0.000000e+00> : vector<16x128xf32>
    %19 = tpu.matmul %16, %18, %cst_23 {dimension_numbers = #tpu.dot_dimension_numbers<[1], [0], [0], [1], [0, 0, 1, 1], [], []>} : vector<16x64xf32>, vector<64x128xf32>, vector<16x128xf32> -> vector<16x128xf32>
    %20 = arith.addf %15, %19 : vector<16x128xf32>
    %c0_24 = arith.constant 0 : index
    %c0_25 = arith.constant 0 : index
    %21 = vector.load %arg3[%c0_24, %c0_25] : memref<1x128xf32, #tpu.memory_space<vmem>>, vector<1x128xf32>
    %22 = vector.broadcast %21 : vector<1x128xf32> to vector<16x128xf32>
    %23 = arith.addf %20, %22 : vector<16x128xf32>
    %cst_26 = arith.constant 0.000000e+00 : f32
    %24 = vector.broadcast %cst_26 : f32 to vector<16x128xf32>
    %25 = arith.maximumf %23, %24 : vector<16x128xf32>
    %cst_27 = arith.constant 0.000000e+00 : f32
    %26 = vector.broadcast %cst_27 : f32 to vector<1x128xf32>
    %c0_28 = arith.constant 0 : index
    %c0_29 = arith.constant 0 : index
    %27 = vector.load %arg9[%c0_28, %c0_29] : memref<18x128xf32, #tpu.memory_space<vmem>>, vector<1x128xf32>
    tpu.vector_store %arg9[%c0_28, %c0_29], %26 {strides = array<i32>} : memref<18x128xf32, #tpu.memory_space<vmem>>, vector<1x128xf32>,
    %cst_30 = arith.constant 0.000000e+00 : f32
    %28 = vector.broadcast %cst_30 : f32 to vector<1x128xf32>
    %c17_31 = arith.constant 17 : index
    %c0_32 = arith.constant 0 : index
    %29 = vector.load %arg9[%c17_31, %c0_32] : memref<18x128xf32, #tpu.memory_space<vmem>>, vector<1x128xf32>
    tpu.vector_store %arg9[%c17_31, %c0_32], %28 {strides = array<i32>} : memref<18x128xf32, #tpu.memory_space<vmem>>, vector<1x128xf32>,
    %c1_33 = arith.constant 1 : index
    %c0_34 = arith.constant 0 : index
    %30 = vector.load %arg9[%c1_33, %c0_34] : memref<18x128xf32, #tpu.memory_space<vmem>>, vector<16x128xf32>
    tpu.vector_store %arg9[%c1_33, %c0_34], %25 {strides = array<i32>} : memref<18x128xf32, #tpu.memory_space<vmem>>, vector<16x128xf32>,
    %c0_35 = arith.constant 0 : index
    %c0_36 = arith.constant 0 : index
    %31 = vector.load %arg9[%c0_35, %c0_36] : memref<18x128xf32, #tpu.memory_space<vmem>>, vector<16x128xf32>
    %c0_37 = arith.constant 0 : index
    %c0_38 = arith.constant 0 : index
    %c0_39 = arith.constant 0 : index
    %32 = vector.load %arg4[%c0_37, %c0_38, %c0_39] : memref<3x128x128xf32, #tpu.memory_space<vmem>>, vector<1x128x128xf32>
    %33 = vector.shape_cast %32 : vector<1x128x128xf32> to vector<128x128xf32>
    %cst_40 = arith.constant dense<0.000000e+00> : vector<16x128xf32>
    %34 = tpu.matmul %31, %33, %cst_40 {dimension_numbers = #tpu.dot_dimension_numbers<[1], [0], [0], [1], [0, 0, 1, 1], [], []>} : vector<16x128xf32>, vector<128x128xf32>, vector<16x128xf32> -> vector<16x128xf32>
    %c1_41 = arith.constant 1 : index
    %c0_42 = arith.constant 0 : index
    %35 = vector.load %arg9[%c1_41, %c0_42] : memref<18x128xf32, #tpu.memory_space<vmem>>, vector<16x128xf32>
    %c1_43 = arith.constant 1 : index
    %c0_44 = arith.constant 0 : index
    %c0_45 = arith.constant 0 : index
    %36 = vector.load %arg4[%c1_43, %c0_44, %c0_45] : memref<3x128x128xf32, #tpu.memory_space<vmem>>, vector<1x128x128xf32>
    %37 = vector.shape_cast %36 : vector<1x128x128xf32> to vector<128x128xf32>
    %cst_46 = arith.constant dense<0.000000e+00> : vector<16x128xf32>
    %38 = tpu.matmul %35, %37, %cst_46 {dimension_numbers = #tpu.dot_dimension_numbers<[1], [0], [0], [1], [0, 0, 1, 1], [], []>} : vector<16x128xf32>, vector<128x128xf32>, vector<16x128xf32> -> vector<16x128xf32>
    %39 = arith.addf %34, %38 : vector<16x128xf32>
    %c2_47 = arith.constant 2 : index
    %c0_48 = arith.constant 0 : index
    %40 = vector.load %arg9[%c2_47, %c0_48] : memref<18x128xf32, #tpu.memory_space<vmem>>, vector<16x128xf32>
    %c2_49 = arith.constant 2 : index
    %c0_50 = arith.constant 0 : index
    %c0_51 = arith.constant 0 : index
    %41 = vector.load %arg4[%c2_49, %c0_50, %c0_51] : memref<3x128x128xf32, #tpu.memory_space<vmem>>, vector<1x128x128xf32>
    %42 = vector.shape_cast %41 : vector<1x128x128xf32> to vector<128x128xf32>
    %cst_52 = arith.constant dense<0.000000e+00> : vector<16x128xf32>
    %43 = tpu.matmul %40, %42, %cst_52 {dimension_numbers = #tpu.dot_dimension_numbers<[1], [0], [0], [1], [0, 0, 1, 1], [], []>} : vector<16x128xf32>, vector<128x128xf32>, vector<16x128xf32> -> vector<16x128xf32>
    %44 = arith.addf %39, %43 : vector<16x128xf32>
    %c0_53 = arith.constant 0 : index
    %c0_54 = arith.constant 0 : index
    %c0_55 = arith.constant 0 : index
    %45 = vector.load %arg1[%c0_53, %c0_54, %c0_55] : memref<1x16x64xf32, #tpu.memory_space<vmem>>, vector<1x16x64xf32>
    %46 = vector.shape_cast %45 : vector<1x16x64xf32> to vector<16x64xf32>
    %c0_56 = arith.constant 0 : index
    %c0_57 = arith.constant 0 : index
    %47 = vector.load %arg5[%c0_56, %c0_57] : memref<64x128xf32, #tpu.memory_space<vmem>>, vector<64x128xf32>
    %cst_58 = arith.constant dense<0.000000e+00> : vector<16x128xf32>
    %48 = tpu.matmul %46, %47, %cst_58 {dimension_numbers = #tpu.dot_dimension_numbers<[1], [0], [0], [1], [0, 0, 1, 1], [], []>} : vector<16x64xf32>, vector<64x128xf32>, vector<16x128xf32> -> vector<16x128xf32>
    %49 = arith.addf %44, %48 : vector<16x128xf32>
    %c0_59 = arith.constant 0 : index
    %c0_60 = arith.constant 0 : index
    %50 = vector.load %arg6[%c0_59, %c0_60] : memref<1x128xf32, #tpu.memory_space<vmem>>, vector<1x128xf32>
    %51 = vector.broadcast %50 : vector<1x128xf32> to vector<16x128xf32>
    %52 = arith.addf %49, %51 : vector<16x128xf32>
    %cst_61 = arith.constant 0.000000e+00 : f32
    %53 = vector.broadcast %cst_61 : f32 to vector<16x128xf32>
    %54 = arith.maximumf %52, %53 : vector<16x128xf32>
    %c0_62 = arith.constant 0 : index
    %c0_63 = arith.constant 0 : index
    %c0_64 = arith.constant 0 : index
    %55 = vector.load %arg7[%c0_62, %c0_63, %c0_64] : memref<1x16x128xf32, #tpu.memory_space<vmem>>, vector<1x16x128xf32>
    %56 = vector.shape_cast %55 : vector<1x16x128xf32> to vector<16x128xf32>
    %57 = vector.shape_cast %54 : vector<16x128xf32> to vector<1x16x128xf32>
    tpu.vector_store %arg7[%c0_62, %c0_63, %c0_64], %57 {strides = array<i32>} : memref<1x16x128xf32, #tpu.memory_space<vmem>>, vector<1x16x128xf32>,
    return
  }
  func.func @transform_0(%arg0: i32) -> (i32, i32, i32) {
    %c0_i32 = arith.constant 0 : i32
    %c0_i32_0 = arith.constant 0 : i32
    %c0_i32_1 = arith.constant 0 : i32
    return %arg0, %c0_i32, %c0_i32_0 : i32, i32, i32
  }
  func.func @transform_1(%arg0: i32) -> (i32, i32, i32) {
    %c0_i32 = arith.constant 0 : i32
    %c0_i32_0 = arith.constant 0 : i32
    %c0_i32_1 = arith.constant 0 : i32
    %c0_i32_2 = arith.constant 0 : i32
    return %c0_i32, %c0_i32_0, %c0_i32_1 : i32, i32, i32
  }
  func.func @transform_2(%arg0: i32) -> (i32, i32) {
    %c0_i32 = arith.constant 0 : i32
    %c0_i32_0 = arith.constant 0 : i32
    %c0_i32_1 = arith.constant 0 : i32
    return %c0_i32, %c0_i32_0 : i32, i32
  }
  func.func @transform_3(%arg0: i32) -> (i32, i32, i32) {
    %c0_i32 = arith.constant 0 : i32
    %c0_i32_0 = arith.constant 0 : i32
    %c0_i32_1 = arith.constant 0 : i32
    %c0_i32_2 = arith.constant 0 : i32
    return %c0_i32, %c0_i32_0, %c0_i32_1 : i32, i32, i32
  }
  func.func @transform_4(%arg0: i32) -> (i32, i32) {
    %c0_i32 = arith.constant 0 : i32
    %c0_i32_0 = arith.constant 0 : i32
    %c0_i32_1 = arith.constant 0 : i32
    return %c0_i32, %c0_i32_0 : i32, i32
  }
  func.func @transform_5(%arg0: i32) -> (i32, i32) {
    %c0_i32 = arith.constant 0 : i32
    %c0_i32_0 = arith.constant 0 : i32
    %c0_i32_1 = arith.constant 0 : i32
    return %c0_i32, %c0_i32_0 : i32, i32
  }
  func.func @transform_6(%arg0: i32) -> (i32, i32, i32) {
    %c0_i32 = arith.constant 0 : i32
    %c0_i32_0 = arith.constant 0 : i32
    %c0_i32_1 = arith.constant 0 : i32
    return %arg0, %c0_i32, %c0_i32_0 : i32, i32, i32
  }
}

</mosaic_0001>

<llo_original>
// kernel: tpu_custom_call.1
$region0: #{tpu_custom_call.1}
  #allocation0 [shape = 'u32[]', space=smem, size = 0x4, offset = 0x4, fixed_abs, tag = 'smem constant byte address 0x4 - core index']
  #allocation1 [shape = 'u32[144,128]{1,0:T(1,128)}', space=vmem, size = 0x12000, scoped, tag = 'internal scratch']
  #allocation2 [shape = 'f32[18,64]{1,0:T(8,128)}', space=vmem, size = 0x3000, scoped, tag = 'scratch operand']
  #allocation3 [shape = 'f32[18,128]{1,0:T(8,128)}', space=vmem, size = 0x3000, scoped, tag = 'scratch operand']
  %s0 = inlined_call_operand.hbm [shape: f32[2,16,64], index: 0, kind: input, shape index: {}]
  %s1 = inlined_call_operand.hbm [shape: f32[3,64,128], index: 1, kind: input, shape index: {}]
  %s2 = inlined_call_operand.vmem [shape: f32[1,128], index: 2, kind: input, shape index: {}]
  %s3 = inlined_call_operand.hbm [shape: f32[3,128,128], index: 3, kind: input, shape index: {}]
  %s4 = inlined_call_operand.hbm [shape: f32[64,128], index: 4, kind: input, shape index: {}]
  %s5 = inlined_call_operand.vmem [shape: f32[1,128], index: 5, kind: input, shape index: {}]
  %s6 = inlined_call_operand.hbm [shape: f32[2,16,128], index: 6, kind: output, shape index: {}]
  %s7 = sld [smem:[#allocation0]]
  $region73: #{tpu_custom_call.1} parent=0
    _
  %s9 = ssub.s32 1, %s7
  %s10 = scalar_select 0, %s9, %s7
  $region1: #{tpu_custom_call.1} parent=0
    #allocation4 [shape = 'u8[16384]{0}', space=vmem, size = 0x4000, scoped, tag = 'input window, operand 0']
    #allocation5 [shape = 's32[2]{0}', space=sflag, size = 0x8, scoped, tag = 'scoped memory for tpu_custom_call.1']
    #allocation6 [shape = 's32[2]{0}', space=sflag, size = 0x8, scoped, tag = 'scoped memory for tpu_custom_call.1']
    #allocation7 [shape = 'u8[98304]{0}', space=vmem, size = 0x18000, scoped, tag = 'input window, operand 1, single buffered']
    #allocation8 [shape = 's32[1]{0}', space=sflag, size = 0x4, scoped, tag = 'scoped memory for tpu_custom_call.1']
    #allocation9 [shape = 'u8[196608]{0}', space=vmem, size = 0x30000, scoped, tag = 'input window, operand 3, single buffered']
    #allocation10 [shape = 'u8[32768]{0}', space=vmem, size = 0x8000, scoped, tag = 'input window, operand 4, single buffered']
    #allocation11 [shape = 's32[1]{0}', space=sflag, size = 0x4, scoped, tag = 'scoped memory for tpu_custom_call.1']
    #allocation12 [shape = 'u8[16384]{0}', space=vmem, size = 0x4000, scoped, tag = 'output window, operand 0']
    %11 = vsyncpa [#allocation5], 0
    %s12 = scalar_lea.sflag [#allocation5], 1
    %13 = vsyncpa %s12, 0
    %14 = vsyncpa [#allocation8], 0
    %15 = vsyncpa [#allocation11], 0
    %16 = vsyncpa [#allocation6], 0
    %s17 = scalar_lea.sflag [#allocation6], 1
    %18 = vsyncpa %s17, 0
    loop: start=0, step=1, limit=4
    $region2: #{tpu_custom_call.1} parent=1 // loop_pre_header
      _
    $region3: #{tpu_custom_call.1} parent=1 // loop_header
      %s20 = sphi 0, %s24
      %p21 = scmp.ge.s32.totalorder %s20, 4
      %s30 = sphi 0, %s32
      %s33 = sphi 0, %s30
      %s34 = sphi 0, %s33
      %s50 = sphi 0, %s34
      %s54 = sphi 0, %s54
      %s56 = sphi 0, %s54
      %s57 = sphi 0, %s56
      %s71 = sphi 0, %s57
      %s75 = sphi 0, %s75
      %s77 = sphi 0, %s75
      %s78 = sphi 0, %s77
      %s92 = sphi 0, %s78
      %s96 = sphi 0, %s96
      %s98 = sphi 0, %s96
      %s99 = sphi 0, %s98
      %s113 = sphi 0, %s99
      %s117 = sphi 0, %s117
      %s119 = sphi 0, %s117
      %s120 = sphi 0, %s119
      %s134 = sphi 0, %s120
      %s138 = sphi 0, %s138
      %s140 = sphi 0, %s138
      %s141 = sphi 0, %s140
      %s155 = sphi 0, %s141
      %s161 = sphi 0, %s163
      %s164 = sphi 0, %s161
      %s165 = sphi 0, %s164
      %s181 = sphi 0, %s165
    $region4: #{tpu_custom_call.1} parent=1 // loop_header_branch
      %23 = sbr.rel (%p21) target = $region8
    $region5: #{tpu_custom_call.1} parent=1 // loop_body
      %s25 = ssub.s32 %s20, 1
      %s26 = ssub.s32 %s20, 2
      %s27 = sadd.s32 %s20, 1
      %s28 = ssub.s32 %s20, %s27
      %p29 = scmp.eq.s32.totalorder %s28, 0
      %s31 = sadd.s32 %s30, 1
      %s32 = scalar_select %p29, %s30, %s31
      %p35 = pneg %p29
      %p36 = scmp.eq.s32.totalorder %s20, 1
      %p37 = por %p35, %p36
      %p38 = scmp.ne.s32.totalorder %s30, %s33
      %p39 = scmp.eq.s32.totalorder %s20, 0
      %p40 = por %p38, %p39
      %p41 = scmp.ne.s32.totalorder %s30, %s33
      %p42 = scmp.eq.s32.totalorder %s25, 1
      %p43 = por %p41, %p42
      %p44 = scmp.ne.s32.totalorder %s33, %s34
      %p45 = scmp.eq.s32.totalorder %s25, 0
      %p46 = por %p44, %p45
      %p47 = scmp.ne.s32.totalorder %s33, %s34
      %p48 = scmp.eq.s32.totalorder %s26, 1
      %p49 = por %p47, %p48
      %p51 = scmp.ne.s32.totalorder %s34, %s50
      %p52 = scmp.eq.s32.totalorder %s26, 0
      %p53 = por %p51, %p52
      %s55 = sadd.s32 %s54, 1
      %p58 = scmp.eq.s32.totalorder %s20, 1
      %p59 = scmp.ne.s32.totalorder %s54, %s56
      %p60 = scmp.eq.s32.totalorder %s20, 0
      %p61 = por %p59, %p60
      %p62 = scmp.ne.s32.totalorder %s54, %s56
      %p63 = scmp.eq.s32.totalorder %s25, 1
      %p64 = por %p62, %p63
      %p65 = scmp.ne.s32.totalorder %s56, %s57
      %p66 = scmp.eq.s32.totalorder %s25, 0
      %p67 = por %p65, %p66
      %p68 = scmp.ne.s32.totalorder %s56, %s57
      %p69 = scmp.eq.s32.totalorder %s26, 1
      %p70 = por %p68, %p69
      %p72 = scmp.ne.s32.totalorder %s57, %s71
      %p73 = scmp.eq.s32.totalorder %s26, 0
      %p74 = por %p72, %p73
      %s76 = sadd.s32 %s75, 1
      %p79 = scmp.eq.s32.totalorder %s20, 1
      %p80 = scmp.ne.s32.totalorder %s75, %s77
      %p81 = scmp.eq.s32.totalorder %s20, 0
      %p82 = por %p80, %p81
      %p83 = scmp.ne.s32.totalorder %s75, %s77
      %p84 = scmp.eq.s32.totalorder %s25, 1
      %p85 = por %p83, %p84
      %p86 = scmp.ne.s32.totalorder %s77, %s78
      %p87 = scmp.eq.s32.totalorder %s25, 0
      %p88 = por %p86, %p87
      %p89 = scmp.ne.s32.totalorder %s77, %s78
      %p90 = scmp.eq.s32.totalorder %s26, 1
      %p91 = por %p89, %p90
      %p93 = scmp.ne.s32.totalorder %s78, %s92
      %p94 = scmp.eq.s32.totalorder %s26, 0
      %p95 = por %p93, %p94
      %s97 = sadd.s32 %s96, 1
      %p100 = scmp.eq.s32.totalorder %s20, 1
      %p101 = scmp.ne.s32.totalorder %s96, %s98
      %p102 = scmp.eq.s32.totalorder %s20, 0
      %p103 = por %p101, %p102
      %p104 = scmp.ne.s32.totalorder %s96, %s98
      %p105 = scmp.eq.s32.totalorder %s25, 1
      %p106 = por %p104, %p105
      %p107 = scmp.ne.s32.totalorder %s98, %s99
      %p108 = scmp.eq.s32.totalorder %s25, 0
      %p109 = por %p107, %p108
      %p110 = scmp.ne.s32.totalorder %s98, %s99
      %p111 = scmp.eq.s32.totalorder %s26, 1
      %p112 = por %p110, %p111
      %p114 = scmp.ne.s32.totalorder %s99, %s113
      %p115 = scmp.eq.s32.totalorder %s26, 0
      %p116 = por %p114, %p115
      %s118 = sadd.s32 %s117, 1
      %p121 = scmp.eq.s32.totalorder %s20, 1
      %p122 = scmp.ne.s32.totalorder %s117, %s119
      %p123 = scmp.eq.s32.totalorder %s20, 0
      %p124 = por %p122, %p123
      %p125 = scmp.ne.s32.totalorder %s117, %s119
      %p126 = scmp.eq.s32.totalorder %s25, 1
      %p127 = por %p125, %p126
      %p128 = scmp.ne.s32.totalorder %s119, %s120
      %p129 = scmp.eq.s32.totalorder %s25, 0
      %p130 = por %p128, %p129
      %p131 = scmp.ne.s32.totalorder %s119, %s120
      %p132 = scmp.eq.s32.totalorder %s26, 1
      %p133 = por %p131, %p132
      %p135 = scmp.ne.s32.totalorder %s120, %s134
      %p136 = scmp.eq.s32.totalorder %s26, 0
      %p137 = por %p135, %p136
      %s139 = sadd.s32 %s138, 1
      %p142 = scmp.eq.s32.totalorder %s20, 1
      %p143 = scmp.ne.s32.totalorder %s138, %s140
      %p144 = scmp.eq.s32.totalorder %s20, 0
      %p145 = por %p143, %p144
      %p146 = scmp.ne.s32.totalorder %s138, %s140
      %p147 = scmp.eq.s32.totalorder %s25, 1
      %p148 = por %p146, %p147
      %p149 = scmp.ne.s32.totalorder %s140, %s141
      %p150 = scmp.eq.s32.totalorder %s25, 0
      %p151 = por %p149, %p150
      %p152 = scmp.ne.s32.totalorder %s140, %s141
      %p153 = scmp.eq.s32.totalorder %s26, 1
      %p154 = por %p152, %p153
      %p156 = scmp.ne.s32.totalorder %s141, %s155
      %p157 = scmp.eq.s32.totalorder %s26, 0
      %p158 = por %p156, %p157
      %s159 = ssub.s32 %s20, %s27
      %p160 = scmp.eq.s32.totalorder %s159, 0
      %s162 = sadd.s32 %s161, 1
      %s163 = scalar_select %p160, %s161, %s162
      %p166 = pneg %p160
      %p167 = scmp.eq.s32.totalorder %s20, 1
      %p168 = por %p166, %p167
      %p169 = scmp.ne.s32.totalorder %s161, %s164
      %p170 = scmp.eq.s32.totalorder %s20, 0
      %p171 = por %p169, %p170
      %p172 = scmp.ne.s32.totalorder %s161, %s164
      %p173 = scmp.eq.s32.totalorder %s25, 1
      %p174 = por %p172, %p173
      %p175 = scmp.ne.s32.totalorder %s164, %s165
      %p176 = scmp.eq.s32.totalorder %s25, 0
      %p177 = por %p175, %p176
      %p178 = scmp.ne.s32.totalorder %s164, %s165
      %p179 = scmp.eq.s32.totalorder %s26, 1
      %p180 = por %p178, %p179
      %p182 = scmp.ne.s32.totalorder %s165, %s181
      %p183 = scmp.eq.s32.totalorder %s26, 0
      %p184 = por %p182, %p183
      %p185 = scmp.le.s32.totalorder 1, %s20
      %p186 = scmp.lt.s32.totalorder %s20, 3
      %p187 = pnand %p185, %p186
      %p188 = pneg %p187
      // Predicated region
      $region9: #{tpu_custom_call.1} parent=5 // pred_check
        _
      $region10: #{tpu_custom_call.1} parent=5 // pred_check_branch
        %190 = sbr.rel (%p187) target = $region12
      $region11: #{tpu_custom_call.1} parent=5 // pred_region
        %s191 = ssub.s32 %s20, 1
        // Predicated region
        $region13: #{tpu_custom_call.1} parent=11 // pred_check
          %p192 = pneg %p67
        $region14: #{tpu_custom_call.1} parent=11 // pred_check_branch
          %194 = sbr.rel (%p192) target = $region16
        $region15: #{tpu_custom_call.1} parent=11 // pred_region
          %s196 = ssub.s32 3072, 3072
          %197 = vsyncadd [#allocation8], %s196
          %s198 = sshll.u32 [#allocation7], 4
          %s199 = int_to_ptr.vmem [resolvable:$true] %s198
          %204 = dma.hbm_to_vmem [thread:$0]  %s1, 3072, %s199, [#allocation8], 128, 128, 8
        $region16: #{tpu_custom_call.1} parent=11 // pred_fallthru
          _
        // Predicated region
        $region17: #{tpu_custom_call.1} parent=11 // pred_check
          %p205 = pneg %p88
        $region18: #{tpu_custom_call.1} parent=11 // pred_check_branch
          %207 = sbr.rel (%p205) target = $region20
        $region19: #{tpu_custom_call.1} parent=11 // pred_region
          _
        $region20: #{tpu_custom_call.1} parent=11 // pred_fallthru
          _
        // Predicated region
        $region21: #{tpu_custom_call.1} parent=11 // pred_check
          %p208 = pneg %p109
        $region22: #{tpu_custom_call.1} parent=11 // pred_check_branch
          %210 = sbr.rel (%p208) target = $region24
        $region23: #{tpu_custom_call.1} parent=11 // pred_region
          %s212 = ssub.s32 6144, 6144
          %213 = vsyncadd [#allocation8], %s212
          %s214 = sshll.u32 [#allocation9], 4
          %s215 = int_to_ptr.vmem [resolvable:$true] %s214
          %220 = dma.hbm_to_vmem [thread:$0]  %s3, 6144, %s215, [#allocation8], 128, 128, 8
        $region24: #{tpu_custom_call.1} parent=11 // pred_fallthru
          _
        // Predicated region
        $region25: #{tpu_custom_call.1} parent=11 // pred_check
          %p221 = pneg %p130
        $region26: #{tpu_custom_call.1} parent=11 // pred_check_branch
          %223 = sbr.rel (%p221) target = $region28
        $region27: #{tpu_custom_call.1} parent=11 // pred_region
          %s225 = ssub.s32 1024, 1024
          %226 = vsyncadd [#allocation11], %s225
          %s227 = sshll.u32 [#allocation10], 4
          %s228 = int_to_ptr.vmem [resolvable:$true] %s227
          %233 = dma.hbm_to_vmem [thread:$0]  %s4, 1024, %s228, [#allocation11], 128, 128, 8
        $region28: #{tpu_custom_call.1} parent=11 // pred_fallthru
          _
        // Predicated region
        $region29: #{tpu_custom_call.1} parent=11 // pred_check
          %p234 = pneg %p151
        $region30: #{tpu_custom_call.1} parent=11 // pred_check_branch
          %236 = sbr.rel (%p234) target = $region32
        $region31: #{tpu_custom_call.1} parent=11 // pred_region
          _
        $region32: #{tpu_custom_call.1} parent=11 // pred_fallthru
          _
      $region12: #{tpu_custom_call.1} parent=5 // pred_fallthru
        _
      %p237 = scmp.lt.s32.totalorder %s20, 2
      // Predicated region
      $region33: #{tpu_custom_call.1} parent=5 // pred_check
        %p238 = pneg %p237
      $region34: #{tpu_custom_call.1} parent=5 // pred_check_branch
        %240 = sbr.rel (%p238) target = $region36
      $region35: #{tpu_custom_call.1} parent=5 // pred_region
        // Predicated region
        $region37: #{tpu_custom_call.1} parent=35 // pred_check
          %p241 = pneg %p40
        $region38: #{tpu_custom_call.1} parent=35 // pred_check_branch
          %243 = sbr.rel (%p241) target = $region40
        $region39: #{tpu_custom_call.1} parent=35 // pred_region
          %s244 = sand.u32 %s30, 1
          %s245 = scalar_lea.sflag [#allocation5], %s244
          %s246 = sand.u32 %s30, 1
          %s247 = smul.addr %s246, 16
          %s248 = scalar_lea.vmem [#allocation4], %s247
          %s250 = ssub.s32 256, 256
          %251 = vsyncadd %s245, %s250
          %s252 = smul.addr %s20, 2
          %s253 = smul.addr %s252, 128
          %s254 = scalar_lea.hbm %s0, %s253
          %s255 = sshll.u32 %s248, 4
          %s256 = int_to_ptr.vmem [resolvable:$true] %s255
          %261 = dma.hbm_to_vmem [thread:$0]  %s254, 256, %s256, %s245, 128, 128, 8
        $region40: #{tpu_custom_call.1} parent=35 // pred_fallthru
          _
      $region36: #{tpu_custom_call.1} parent=5 // pred_fallthru
        _
      %p262 = scmp.le.s32.totalorder 1, %s20
      %p263 = scmp.lt.s32.totalorder %s20, 3
      %p264 = pnand %p262, %p263
      %p265 = pneg %p264
      // Predicated region
      $region41: #{tpu_custom_call.1} parent=5 // pred_check
        _
      $region42: #{tpu_custom_call.1} parent=5 // pred_check_branch
        %267 = sbr.rel (%p264) target = $region44
      $region43: #{tpu_custom_call.1} parent=5 // pred_region
        %s268 = ssub.s32 %s20, 1
        %s269 = sand.u32 %s33, 1
        %s270 = scalar_lea.sflag [#allocation5], %s269
        %s271 = sand.u32 %s33, 1
        %s272 = smul.addr %s271, 16
        %s273 = scalar_lea.vmem [#allocation4], %s272
        // Predicated region
        $region45: #{tpu_custom_call.1} parent=43 // pred_check
          %p274 = pneg %p46
        $region46: #{tpu_custom_call.1} parent=43 // pred_check_branch
          %276 = sbr.rel (%p274) target = $region48
        $region47: #{tpu_custom_call.1} parent=43 // pred_region
          %277 = dma.done %s270, 256
        $region48: #{tpu_custom_call.1} parent=43 // pred_fallthru
          _
        // Predicated region
        $region49: #{tpu_custom_call.1} parent=43 // pred_check
          %p278 = pneg %p67
        $region50: #{tpu_custom_call.1} parent=43 // pred_check_branch
          %280 = sbr.rel (%p278) target = $region52
        $region51: #{tpu_custom_call.1} parent=43 // pred_region
          %281 = dma.done [#allocation8], 3072
        $region52: #{tpu_custom_call.1} parent=43 // pred_fallthru
          _
        // Predicated region
        $region53: #{tpu_custom_call.1} parent=43 // pred_check
          %p282 = pneg %p109
        $region54: #{tpu_custom_call.1} parent=43 // pred_check_branch
          %284 = sbr.rel (%p282) target = $region56
        $region55: #{tpu_custom_call.1} parent=43 // pred_region
          %285 = dma.done [#allocation8], 6144
        $region56: #{tpu_custom_call.1} parent=43 // pred_fallthru
          _
        // Predicated region
        $region57: #{tpu_custom_call.1} parent=43 // pred_check
          %p286 = pneg %p130
        $region58: #{tpu_custom_call.1} parent=43 // pred_check_branch
          %288 = sbr.rel (%p286) target = $region60
        $region59: #{tpu_custom_call.1} parent=43 // pred_region
          %289 = dma.done [#allocation11], 1024
        $region60: #{tpu_custom_call.1} parent=43 // pred_fallthru
          _
        %s290 = sand.u32 %s33, 1
        %s291 = scalar_lea.sflag [#allocation5], %s290
        %s292 = sand.u32 %s33, 1
        %s293 = smul.addr %s292, 16
        %s294 = scalar_lea.vmem [#allocation4], %s293
        %p295 = pneg %p46
        %p296 = pneg %p43
        %p297 = pneg %p67
        %p298 = pneg %p64
        %p299 = pneg %p88
        %p300 = pneg %p85
        %p301 = pneg %p109
        %p302 = pneg %p106
        %p303 = pneg %p130
        %p304 = pneg %p127
        %p305 = pneg %p151
        %p306 = pneg %p148
        %p307 = pneg %p177
        %p308 = pneg %p174
        %s309 = sand.u32 %s164, 1
        %s310 = scalar_lea.sflag [#allocation6], %s309
        %s311 = sand.u32 %s164, 1
        %s312 = smul.addr %s311, 16
        %s313 = scalar_lea.vmem [#allocation12], %s312
        %vm314 = vcmask 516096
        %315 = vst.msk [vmem:[#allocation2] sm:$0x1] %vm314, 0.0
        %316 = vst.msk [vmem:[#allocation2 + $0x11] sm:$0x1] %vm314, 0.0
        %v317 = vld [vmem:[%s273] sm:$0xff]
        %v318 = vld [vmem:[%s273 + $0x8] sm:$0xff]
        %vm319 = vcmask 523264
        %320 = vst.msk [vmem:[#allocation2 + $0x1] sm:$0xff] %vm319, %v317
        %321 = vst.msk [vmem:[#allocation2 + $0x9] sm:$0xff] %vm319, %v318
        %v322 = vld [vmem:[#allocation2] sm:$0xff]
        %v323 = vld [vmem:[#allocation2 + $0x8] sm:$0xff]
        %v324 = vld [vmem:[#allocation7] sm:$0xff]
        %v325 = vld [vmem:[#allocation7 + $0x8] sm:$0xff]
        %v326 = vld [vmem:[#allocation7 + $0x10] sm:$0xff]
        %v327 = vld [vmem:[#allocation7 + $0x18] sm:$0xff]
        %v328 = vld [vmem:[#allocation7 + $0x20] sm:$0xff]
        %v329 = vld [vmem:[#allocation7 + $0x28] sm:$0xff]
        %v330 = vld [vmem:[#allocation7 + $0x30] sm:$0xff]
        %v331 = vld [vmem:[#allocation7 + $0x38] sm:$0xff]
        %v332 = vld [vmem:[#allocation2 + $0x1] sm:$0xff]
        %v333 = vld [vmem:[#allocation2 + $0x9] sm:$0xff]
        %s334 = scalar_lea.vmem [#allocation7], 64
        %v335 = vld [vmem:[%s334] sm:$0xff]
        %v336 = vld [vmem:[%s334 + $0x8] sm:$0xff]
        %v337 = vld [vmem:[%s334 + $0x10] sm:$0xff]
        %v338 = vld [vmem:[%s334 + $0x18] sm:$0xff]
        %v339 = vld [vmem:[%s334 + $0x20] sm:$0xff]
        %v340 = vld [vmem:[%s334 + $0x28] sm:$0xff]
        %v341 = vld [vmem:[%s334 + $0x30] sm:$0xff]
        %v342 = vld [vmem:[%s334 + $0x38] sm:$0xff]
        %v344 = vsel %vm319, %v332, 0
        %v347 = vsel %vm319, %v333, 0
        %349 = vmatprep.subr.mxu0 0.0
        %350 = vmatpush1.msra.mxu0 %v335
        %351 = vmatprep.subr.mxu0 0.0
        %352 = vmatpush1.msra.mxu0 %v336
        %353 = vmatprep.subr.mxu0 0.0
        %354 = vmatpush1.msra.mxu0 %v337
        %355 = vmatprep.subr.mxu0 0.0
        %356 = vmatpush1.msra.mxu0 %v338
        %357 = vmatprep.subr.mxu0 0.0
        %358 = vmatpush1.msra.mxu0 %v339
        %359 = vmatprep.subr.mxu0 0.0
        %360 = vmatpush1.msra.mxu0 %v340
        %361 = vmatprep.subr.mxu0 0.0
        %362 = vmatpush1.msra.mxu0 %v341
        %363 = vmatprep.subr.mxu0 0.0
        %364 = vmatpush1.msra.mxu0 %v342
        %365 = vmatprep.subr.mxu0 0.0
        %366 = vmatpush1.msra.mxu0 0.0
        %367 = vmatprep.subr.mxu0 0.0
        %368 = vmatpush1.msra.mxu0 0.0
        %369 = vmatprep.subr.mxu0 0.0
        %370 = vmatpush1.msra.mxu0 0.0
        %371 = vmatprep.subr.mxu0 0.0
        %372 = vmatpush1.msra.mxu0 0.0
        %373 = vmatprep.subr.mxu0 0.0
        %374 = vmatpush1.msra.mxu0 0.0
        %375 = vmatprep.subr.mxu0 0.0
        %376 = vmatpush1.msra.mxu0 0.0
        %377 = vmatprep.subr.mxu0 0.0
        %378 = vmatpush1.msra.mxu0 0.0
        %379 = vmatprep.subr.mxu0 0.0
        %380 = vmatpush1.msra.mxu0 0.0
        %381 = vmatprep.subr.mxu0 0.0
        %382 = vmatpush1.msra.mxu0 0.0
        %383 = vmatprep.subr.mxu0 0.0
        %384 = vmatpush1.msra.mxu0 0.0
        %385 = vmatprep.subr.mxu0 0.0
        %386 = vmatpush1.msra.mxu0 0.0
        %387 = vmatprep.subr.mxu0 0.0
        %388 = vmatpush1.msra.mxu0 0.0
        %389 = vmatprep.subr.mxu0 0.0
        %390 = vmatpush1.msra.mxu0 0.0
        %391 = vmatprep.subr.mxu0 0.0
        %392 = vmatpush1.msra.mxu0 0.0
        %393 = vmatprep.subr.mxu0 0.0
        %394 = vmatpush1.msra.mxu0 0.0
        %395 = vmatprep.subr.mxu0 0.0
        %396 = vmatpush1.msra.mxu0 0.0
        %397 = vmatprep.subr.mxu0 0.0
        %398 = vmatpush1.msra.mxu0 0.0
        %399 = vmatprep.subr.mxu0 0.0
        %400 = vmatpush1.msra.mxu0 0.0
        %401 = vmatprep.subr.mxu0 0.0
        %402 = vmatpush1.msra.mxu0 0.0
        %403 = vmatprep.subr.mxu0 0.0
        %404 = vmatpush1.msra.mxu0 0.0
        %405 = vmatprep.subr.mxu0 0.0
        %406 = vmatpush1.msra.mxu0 0.0
        %407 = vmatprep.subr.mxu0 0.0
        %408 = vmatpush1.msra.mxu0 0.0
        %409 = vmatprep.subr.mxu0 0.0
        %410 = vmatpush1.msra.mxu0 0.0
        %411 = vmatprep.subr.mxu0 0.0
        %412 = vmatpush1.msra.mxu0 0.0
        %413 = vmatprep.mubr.f32.mxu0 0.0
        %414 = vmatmul.mubr.f32.gmra.mrb[0].mxu0 %v344
        %v415 = vpop.f32.mrb[0].mxu0
        %v416 = vadd.f32 0.0, %v415
        %v417 = vpop.f32.mrb[0].mxu0
        %418 = vmatprep.mubr.f32.mxu0 0.0
        %419 = vmatmul.mubr.f32.gmra.mrb[0].mxu0 %v347
        %v420 = vpop.f32.mrb[0].mxu0
        %v421 = vadd.f32 0.0, %v420
        %v422 = vpop.f32.mrb[0].mxu0
        %423 = vdwg.mxu0
        %v425 = vsel %vm319, %v322, 0
        %v428 = vsel %vm319, %v323, 0
        %430 = vmatprep.subr.mxu0 0.0
        %431 = vmatpush1.msra.mxu0 %v324
        %432 = vmatprep.subr.mxu0 0.0
        %433 = vmatpush1.msra.mxu0 %v325
        %434 = vmatprep.subr.mxu0 0.0
        %435 = vmatpush1.msra.mxu0 %v326
        %436 = vmatprep.subr.mxu0 0.0
        %437 = vmatpush1.msra.mxu0 %v327
        %438 = vmatprep.subr.mxu0 0.0
        %439 = vmatpush1.msra.mxu0 %v328
        %440 = vmatprep.subr.mxu0 0.0
        %441 = vmatpush1.msra.mxu0 %v329
        %442 = vmatprep.subr.mxu0 0.0
        %443 = vmatpush1.msra.mxu0 %v330
        %444 = vmatprep.subr.mxu0 0.0
        %445 = vmatpush1.msra.mxu0 %v331
        %446 = vmatprep.subr.mxu0 0.0
        %447 = vmatpush1.msra.mxu0 0.0
        %448 = vmatprep.subr.mxu0 0.0
        %449 = vmatpush1.msra.mxu0 0.0
        %450 = vmatprep.subr.mxu0 0.0
        %451 = vmatpush1.msra.mxu0 0.0
        %452 = vmatprep.subr.mxu0 0.0
        %453 = vmatpush1.msra.mxu0 0.0
        %454 = vmatprep.subr.mxu0 0.0
        %455 = vmatpush1.msra.mxu0 0.0
        %456 = vmatprep.subr.mxu0 0.0
        %457 = vmatpush1.msra.mxu0 0.0
        %458 = vmatprep.subr.mxu0 0.0
        %459 = vmatpush1.msra.mxu0 0.0
        %460 = vmatprep.subr.mxu0 0.0
        %461 = vmatpush1.msra.mxu0 0.0
        %462 = vmatprep.subr.mxu0 0.0
        %463 = vmatpush1.msra.mxu0 0.0
        %464 = vmatprep.subr.mxu0 0.0
        %465 = vmatpush1.msra.mxu0 0.0
        %466 = vmatprep.subr.mxu0 0.0
        %467 = vmatpush1.msra.mxu0 0.0
        %468 = vmatprep.subr.mxu0 0.0
        %469 = vmatpush1.msra.mxu0 0.0
        %470 = vmatprep.subr.mxu0 0.0
        %471 = vmatpush1.msra.mxu0 0.0
        %472 = vmatprep.subr.mxu0 0.0
        %473 = vmatpush1.msra.mxu0 0.0
        %474 = vmatprep.subr.mxu0 0.0
        %475 = vmatpush1.msra.mxu0 0.0
        %476 = vmatprep.subr.mxu0 0.0
        %477 = vmatpush1.msra.mxu0 0.0
        %478 = vmatprep.subr.mxu0 0.0
        %479 = vmatpush1.msra.mxu0 0.0
        %480 = vmatprep.subr.mxu0 0.0
        %481 = vmatpush1.msra.mxu0 0.0
        %482 = vmatprep.subr.mxu0 0.0
        %483 = vmatpush1.msra.mxu0 0.0
        %484 = vmatprep.subr.mxu0 0.0
        %485 = vmatpush1.msra.mxu0 0.0
        %486 = vmatprep.subr.mxu0 0.0
        %487 = vmatpush1.msra.mxu0 0.0
        %488 = vmatprep.subr.mxu0 0.0
        %489 = vmatpush1.msra.mxu0 0.0
        %490 = vmatprep.subr.mxu0 0.0
        %491 = vmatpush1.msra.mxu0 0.0
        %492 = vmatprep.subr.mxu0 0.0
        %493 = vmatpush1.msra.mxu0 0.0
        %494 = vmatprep.mubr.f32.mxu0 0.0
        %495 = vmatmul.mubr.f32.gmra.mrb[0].mxu0 %v425
        %v496 = vpop.f32.mrb[0].mxu0
        %v497 = vadd.f32 %v416, %v496
        %v498 = vpop.f32.mrb[0].mxu0
        %499 = vmatprep.mubr.f32.mxu0 0.0
        %500 = vmatmul.mubr.f32.gmra.mrb[0].mxu0 %v428
        %v501 = vpop.f32.mrb[0].mxu0
        %v502 = vadd.f32 %v421, %v501
        %v503 = vpop.f32.mrb[0].mxu0
        %504 = vdwg.mxu0
        %v505 = vld [vmem:[#allocation2 + $0x2] sm:$0xff]
        %v506 = vld [vmem:[#allocation2 + $0xa] sm:$0xff]
        %s507 = scalar_lea.vmem [#allocation7], 128
        %v508 = vld [vmem:[%s507] sm:$0xff]
        %v509 = vld [vmem:[%s507 + $0x8] sm:$0xff]
        %v510 = vld [vmem:[%s507 + $0x10] sm:$0xff]
        %v511 = vld [vmem:[%s507 + $0x18] sm:$0xff]
        %v512 = vld [vmem:[%s507 + $0x20] sm:$0xff]
        %v513 = vld [vmem:[%s507 + $0x28] sm:$0xff]
        %v514 = vld [vmem:[%s507 + $0x30] sm:$0xff]
        %v515 = vld [vmem:[%s507 + $0x38] sm:$0xff]
        %v517 = vsel %vm319, %v505, 0
        %v520 = vsel %vm319, %v506, 0
        %522 = vmatprep.subr.mxu0 0.0
        %523 = vmatpush1.msra.mxu0 %v508
        %524 = vmatprep.subr.mxu0 0.0
        %525 = vmatpush1.msra.mxu0 %v509
        %526 = vmatprep.subr.mxu0 0.0
        %527 = vmatpush1.msra.mxu0 %v510
        %528 = vmatprep.subr.mxu0 0.0
        %529 = vmatpush1.msra.mxu0 %v511
        %530 = vmatprep.subr.mxu0 0.0
        %531 = vmatpush1.msra.mxu0 %v512
        %532 = vmatprep.subr.mxu0 0.0
        %533 = vmatpush1.msra.mxu0 %v513
        %534 = vmatprep.subr.mxu0 0.0
        %535 = vmatpush1.msra.mxu0 %v514
        %536 = vmatprep.subr.mxu0 0.0
        %537 = vmatpush1.msra.mxu0 %v515
        %538 = vmatprep.subr.mxu0 0.0
        %539 = vmatpush1.msra.mxu0 0.0
        %540 = vmatprep.subr.mxu0 0.0
        %541 = vmatpush1.msra.mxu0 0.0
        %542 = vmatprep.subr.mxu0 0.0
        %543 = vmatpush1.msra.mxu0 0.0
        %544 = vmatprep.subr.mxu0 0.0
        %545 = vmatpush1.msra.mxu0 0.0
        %546 = vmatprep.subr.mxu0 0.0
        %547 = vmatpush1.msra.mxu0 0.0
        %548 = vmatprep.subr.mxu0 0.0
        %549 = vmatpush1.msra.mxu0 0.0
        %550 = vmatprep.subr.mxu0 0.0
        %551 = vmatpush1.msra.mxu0 0.0
        %552 = vmatprep.subr.mxu0 0.0
        %553 = vmatpush1.msra.mxu0 0.0
        %554 = vmatprep.subr.mxu0 0.0
        %555 = vmatpush1.msra.mxu0 0.0
        %556 = vmatprep.subr.mxu0 0.0
        %557 = vmatpush1.msra.mxu0 0.0
        %558 = vmatprep.subr.mxu0 0.0
        %559 = vmatpush1.msra.mxu0 0.0
        %560 = vmatprep.subr.mxu0 0.0
        %561 = vmatpush1.msra.mxu0 0.0
        %562 = vmatprep.subr.mxu0 0.0
        %563 = vmatpush1.msra.mxu0 0.0
        %564 = vmatprep.subr.mxu0 0.0
        %565 = vmatpush1.msra.mxu0 0.0
        %566 = vmatprep.subr.mxu0 0.0
        %567 = vmatpush1.msra.mxu0 0.0
        %568 = vmatprep.subr.mxu0 0.0
        %569 = vmatpush1.msra.mxu0 0.0
        %570 = vmatprep.subr.mxu0 0.0
        %571 = vmatpush1.msra.mxu0 0.0
        %572 = vmatprep.subr.mxu0 0.0
        %573 = vmatpush1.msra.mxu0 0.0
        %574 = vmatprep.subr.mxu0 0.0
        %575 = vmatpush1.msra.mxu0 0.0
        %576 = vmatprep.subr.mxu0 0.0
        %577 = vmatpush1.msra.mxu0 0.0
        %578 = vmatprep.subr.mxu0 0.0
        %579 = vmatpush1.msra.mxu0 0.0
        %580 = vmatprep.subr.mxu0 0.0
        %581 = vmatpush1.msra.mxu0 0.0
        %582 = vmatprep.subr.mxu0 0.0
        %583 = vmatpush1.msra.mxu0 0.0
        %584 = vmatprep.subr.mxu0 0.0
        %585 = vmatpush1.msra.mxu0 0.0
        %586 = vmatprep.mubr.f32.mxu0 0.0
        %587 = vmatmul.mubr.f32.gmra.mrb[0].mxu0 %v517
        %v588 = vpop.f32.mrb[0].mxu0
        %v589 = vadd.f32 0.0, %v588
        %v590 = vpop.f32.mrb[0].mxu0
        %591 = vmatprep.mubr.f32.mxu0 0.0
        %592 = vmatmul.mubr.f32.gmra.mrb[0].mxu0 %v520
        %v593 = vpop.f32.mrb[0].mxu0
        %v594 = vadd.f32 0.0, %v593
        %v595 = vpop.f32.mrb[0].mxu0
        %596 = vdwg.mxu0
        %v597 = vadd.f32 %v497, %v589
        %v598 = vadd.f32 %v502, %v594
        %v599 = vld [vmem:[%s2] sm:$0x1]
        %v601 = vlaneseq
        %v602 = vshrl.u32 %v601, 7
        %v603 = vsub.s32 0, %v602
        %v604 = vrot.slane %v599, %v603
        %v606 = vadd.f32 %v597, %v604
        %v607 = vadd.f32 %v598, %v604
        %v608 = vmax.f32 %v606, 0.0
        %v609 = vmax.f32 %v607, 0.0
        %610 = vst [vmem:[#allocation3] sm:$0x1] 0.0
        %611 = vst [vmem:[#allocation3 + $0x11] sm:$0x1] 0.0
        %612 = vst [vmem:[#allocation3 + $0x1] sm:$0xff] %v608
        %613 = vst [vmem:[#allocation3 + $0x9] sm:$0xff] %v609
        %v614 = vld [vmem:[#allocation3] sm:$0xff]
        %v615 = vld [vmem:[#allocation3 + $0x8] sm:$0xff]
        %v616 = vld [vmem:[#allocation9] sm:$0xff]
        %v617 = vld [vmem:[#allocation9 + $0x8] sm:$0xff]
        %v618 = vld [vmem:[#allocation9 + $0x10] sm:$0xff]
        %v619 = vld [vmem:[#allocation9 + $0x18] sm:$0xff]
        %v620 = vld [vmem:[#allocation9 + $0x20] sm:$0xff]
        %v621 = vld [vmem:[#allocation9 + $0x28] sm:$0xff]
        %v622 = vld [vmem:[#allocation9 + $0x30] sm:$0xff]
        %v623 = vld [vmem:[#allocation9 + $0x38] sm:$0xff]
        %v624 = vld [vmem:[#allocation9 + $0x40] sm:$0xff]
        %v625 = vld [vmem:[#allocation9 + $0x48] sm:$0xff]
        %v626 = vld [vmem:[#allocation9 + $0x50] sm:$0xff]
        %v627 = vld [vmem:[#allocation9 + $0x58] sm:$0xff]
        %v628 = vld [vmem:[#allocation9 + $0x60] sm:$0xff]
        %v629 = vld [vmem:[#allocation9 + $0x68] sm:$0xff]
        %v630 = vld [vmem:[#allocation9 + $0x70] sm:$0xff]
        %v631 = vld [vmem:[#allocation9 + $0x78] sm:$0xff]
        %v632 = vld [vmem:[#allocation3 + $0x1] sm:$0xff]
        %v633 = vld [vmem:[#allocation3 + $0x9] sm:$0xff]
        %s634 = scalar_lea.vmem [#allocation9], 128
        %v635 = vld [vmem:[%s634] sm:$0xff]
        %v636 = vld [vmem:[%s634 + $0x8] sm:$0xff]
        %v637 = vld [vmem:[%s634 + $0x10] sm:$0xff]
        %v638 = vld [vmem:[%s634 + $0x18] sm:$0xff]
        %v639 = vld [vmem:[%s634 + $0x20] sm:$0xff]
        %v640 = vld [vmem:[%s634 + $0x28] sm:$0xff]
        %v641 = vld [vmem:[%s634 + $0x30] sm:$0xff]
        %v642 = vld [vmem:[%s634 + $0x38] sm:$0xff]
        %v643 = vld [vmem:[%s634 + $0x40] sm:$0xff]
        %v644 = vld [vmem:[%s634 + $0x48] sm:$0xff]
        %v645 = vld [vmem:[%s634 + $0x50] sm:$0xff]
        %v646 = vld [vmem:[%s634 + $0x58] sm:$0xff]
        %v647 = vld [vmem:[%s634 + $0x60] sm:$0xff]
        %v648 = vld [vmem:[%s634 + $0x68] sm:$0xff]
        %v649 = vld [vmem:[%s634 + $0x70] sm:$0xff]
        %v650 = vld [vmem:[%s634 + $0x78] sm:$0xff]
        %651 = vmatprep.subr.mxu0 0.0
        %652 = vmatpush1.msra.mxu0 %v635
        %653 = vmatprep.subr.mxu0 0.0
        %654 = vmatpush1.msra.mxu0 %v636
        %655 = vmatprep.subr.mxu0 0.0
        %656 = vmatpush1.msra.mxu0 %v637
        %657 = vmatprep.subr.mxu0 0.0
        %658 = vmatpush1.msra.mxu0 %v638
        %659 = vmatprep.subr.mxu0 0.0
        %660 = vmatpush1.msra.mxu0 %v639
        %661 = vmatprep.subr.mxu0 0.0
        %662 = vmatpush1.msra.mxu0 %v640
        %663 = vmatprep.subr.mxu0 0.0
        %664 = vmatpush1.msra.mxu0 %v641
        %665 = vmatprep.subr.mxu0 0.0
        %666 = vmatpush1.msra.mxu0 %v642
        %667 = vmatprep.subr.mxu0 0.0
        %668 = vmatpush1.msra.mxu0 %v643
        %669 = vmatprep.subr.mxu0 0.0
        %670 = vmatpush1.msra.mxu0 %v644
        %671 = vmatprep.subr.mxu0 0.0
        %672 = vmatpush1.msra.mxu0 %v645
        %673 = vmatprep.subr.mxu0 0.0
        %674 = vmatpush1.msra.mxu0 %v646
        %675 = vmatprep.subr.mxu0 0.0
        %676 = vmatpush1.msra.mxu0 %v647
        %677 = vmatprep.subr.mxu0 0.0
        %678 = vmatpush1.msra.mxu0 %v648
        %679 = vmatprep.subr.mxu0 0.0
        %680 = vmatpush1.msra.mxu0 %v649
        %681 = vmatprep.subr.mxu0 0.0
        %682 = vmatpush1.msra.mxu0 %v650
        %683 = vmatprep.subr.mxu0 0.0
        %684 = vmatpush1.msra.mxu0 0.0
        %685 = vmatprep.subr.mxu0 0.0
        %686 = vmatpush1.msra.mxu0 0.0
        %687 = vmatprep.subr.mxu0 0.0
        %688 = vmatpush1.msra.mxu0 0.0
        %689 = vmatprep.subr.mxu0 0.0
        %690 = vmatpush1.msra.mxu0 0.0
        %691 = vmatprep.subr.mxu0 0.0
        %692 = vmatpush1.msra.mxu0 0.0
        %693 = vmatprep.subr.mxu0 0.0
        %694 = vmatpush1.msra.mxu0 0.0
        %695 = vmatprep.subr.mxu0 0.0
        %696 = vmatpush1.msra.mxu0 0.0
        %697 = vmatprep.subr.mxu0 0.0
        %698 = vmatpush1.msra.mxu0 0.0
        %699 = vmatprep.subr.mxu0 0.0
        %700 = vmatpush1.msra.mxu0 0.0
        %701 = vmatprep.subr.mxu0 0.0
        %702 = vmatpush1.msra.mxu0 0.0
        %703 = vmatprep.subr.mxu0 0.0
        %704 = vmatpush1.msra.mxu0 0.0
        %705 = vmatprep.subr.mxu0 0.0
        %706 = vmatpush1.msra.mxu0 0.0
        %707 = vmatprep.subr.mxu0 0.0
        %708 = vmatpush1.msra.mxu0 0.0
        %709 = vmatprep.subr.mxu0 0.0
        %710 = vmatpush1.msra.mxu0 0.0
        %711 = vmatprep.subr.mxu0 0.0
        %712 = vmatpush1.msra.mxu0 0.0
        %713 = vmatprep.subr.mxu0 0.0
        %714 = vmatpush1.msra.mxu0 0.0
        %715 = vmatprep.mubr.f32.mxu0 0.0
        %716 = vmatmul.mubr.f32.gmra.mrb[0].mxu0 %v632
        %v717 = vpop.f32.mrb[0].mxu0
        %v718 = vadd.f32 0.0, %v717
        %v719 = vpop.f32.mrb[0].mxu0
        %720 = vmatprep.mubr.f32.mxu0 0.0
        %721 = vmatmul.mubr.f32.gmra.mrb[0].mxu0 %v633
        %v722 = vpop.f32.mrb[0].mxu0
        %v723 = vadd.f32 0.0, %v722
        %v724 = vpop.f32.mrb[0].mxu0
        %725 = vdwg.mxu0
        %726 = vmatprep.subr.mxu0 0.0
        %727 = vmatpush1.msra.mxu0 %v616
        %728 = vmatprep.subr.mxu0 0.0
        %729 = vmatpush1.msra.mxu0 %v617
        %730 = vmatprep.subr.mxu0 0.0
        %731 = vmatpush1.msra.mxu0 %v618
        %732 = vmatprep.subr.mxu0 0.0
        %733 = vmatpush1.msra.mxu0 %v619
        %734 = vmatprep.subr.mxu0 0.0
        %735 = vmatpush1.msra.mxu0 %v620
        %736 = vmatprep.subr.mxu0 0.0
        %737 = vmatpush1.msra.mxu0 %v621
        %738 = vmatprep.subr.mxu0 0.0
        %739 = vmatpush1.msra.mxu0 %v622
        %740 = vmatprep.subr.mxu0 0.0
        %741 = vmatpush1.msra.mxu0 %v623
        %742 = vmatprep.subr.mxu0 0.0
        %743 = vmatpush1.msra.mxu0 %v624
        %744 = vmatprep.subr.mxu0 0.0
        %745 = vmatpush1.msra.mxu0 %v625
        %746 = vmatprep.subr.mxu0 0.0
        %747 = vmatpush1.msra.mxu0 %v626
        %748 = vmatprep.subr.mxu0 0.0
        %749 = vmatpush1.msra.mxu0 %v627
        %750 = vmatprep.subr.mxu0 0.0
        %751 = vmatpush1.msra.mxu0 %v628
        %752 = vmatprep.subr.mxu0 0.0
        %753 = vmatpush1.msra.mxu0 %v629
        %754 = vmatprep.subr.mxu0 0.0
        %755 = vmatpush1.msra.mxu0 %v630
        %756 = vmatprep.subr.mxu0 0.0
        %757 = vmatpush1.msra.mxu0 %v631
        %758 = vmatprep.subr.mxu0 0.0
        %759 = vmatpush1.msra.mxu0 0.0
        %760 = vmatprep.subr.mxu0 0.0
        %761 = vmatpush1.msra.mxu0 0.0
        %762 = vmatprep.subr.mxu0 0.0
        %763 = vmatpush1.msra.mxu0 0.0
        %764 = vmatprep.subr.mxu0 0.0
        %765 = vmatpush1.msra.mxu0 0.0
        %766 = vmatprep.subr.mxu0 0.0
        %767 = vmatpush1.msra.mxu0 0.0
        %768 = vmatprep.subr.mxu0 0.0
        %769 = vmatpush1.msra.mxu0 0.0
        %770 = vmatprep.subr.mxu0 0.0
        %771 = vmatpush1.msra.mxu0 0.0
        %772 = vmatprep.subr.mxu0 0.0
        %773 = vmatpush1.msra.mxu0 0.0
        %774 = vmatprep.subr.mxu0 0.0
        %775 = vmatpush1.msra.mxu0 0.0
        %776 = vmatprep.subr.mxu0 0.0
        %777 = vmatpush1.msra.mxu0 0.0
        %778 = vmatprep.subr.mxu0 0.0
        %779 = vmatpush1.msra.mxu0 0.0
        %780 = vmatprep.subr.mxu0 0.0
        %781 = vmatpush1.msra.mxu0 0.0
        %782 = vmatprep.subr.mxu0 0.0
        %783 = vmatpush1.msra.mxu0 0.0
        %784 = vmatprep.subr.mxu0 0.0
        %785 = vmatpush1.msra.mxu0 0.0
        %786 = vmatprep.subr.mxu0 0.0
        %787 = vmatpush1.msra.mxu0 0.0
        %788 = vmatprep.subr.mxu0 0.0
        %789 = vmatpush1.msra.mxu0 0.0
        %790 = vmatprep.mubr.f32.mxu0 0.0
        %791 = vmatmul.mubr.f32.gmra.mrb[0].mxu0 %v614
        %v792 = vpop.f32.mrb[0].mxu0
        %v793 = vadd.f32 %v718, %v792
        %v794 = vpop.f32.mrb[0].mxu0
        %795 = vmatprep.mubr.f32.mxu0 0.0
        %796 = vmatmul.mubr.f32.gmra.mrb[0].mxu0 %v615
        %v797 = vpop.f32.mrb[0].mxu0
        %v798 = vadd.f32 %v723, %v797
        %v799 = vpop.f32.mrb[0].mxu0
        %800 = vdwg.mxu0
        %v801 = vld [vmem:[#allocation3 + $0x2] sm:$0xff]
        %v802 = vld [vmem:[#allocation3 + $0xa] sm:$0xff]
        %s803 = scalar_lea.vmem [#allocation9], 256
        %v804 = vld [vmem:[%s803] sm:$0xff]
        %v805 = vld [vmem:[%s803 + $0x8] sm:$0xff]
        %v806 = vld [vmem:[%s803 + $0x10] sm:$0xff]
        %v807 = vld [vmem:[%s803 + $0x18] sm:$0xff]
        %v808 = vld [vmem:[%s803 + $0x20] sm:$0xff]
        %v809 = vld [vmem:[%s803 + $0x28] sm:$0xff]
        %v810 = vld [vmem:[%s803 + $0x30] sm:$0xff]
        %v811 = vld [vmem:[%s803 + $0x38] sm:$0xff]
        %v812 = vld [vmem:[%s803 + $0x40] sm:$0xff]
        %v813 = vld [vmem:[%s803 + $0x48] sm:$0xff]
        %v814 = vld [vmem:[%s803 + $0x50] sm:$0xff]
        %v815 = vld [vmem:[%s803 + $0x58] sm:$0xff]
        %v816 = vld [vmem:[%s803 + $0x60] sm:$0xff]
        %v817 = vld [vmem:[%s803 + $0x68] sm:$0xff]
        %v818 = vld [vmem:[%s803 + $0x70] sm:$0xff]
        %v819 = vld [vmem:[%s803 + $0x78] sm:$0xff]
        %820 = vmatprep.subr.mxu0 0.0
        %821 = vmatpush1.msra.mxu0 %v804
        %822 = vmatprep.subr.mxu0 0.0
        %823 = vmatpush1.msra.mxu0 %v805
        %824 = vmatprep.subr.mxu0 0.0
        %825 = vmatpush1.msra.mxu0 %v806
        %826 = vmatprep.subr.mxu0 0.0
        %827 = vmatpush1.msra.mxu0 %v807
        %828 = vmatprep.subr.mxu0 0.0
        %829 = vmatpush1.msra.mxu0 %v808
        %830 = vmatprep.subr.mxu0 0.0
        %831 = vmatpush1.msra.mxu0 %v809
        %832 = vmatprep.subr.mxu0 0.0
        %833 = vmatpush1.msra.mxu0 %v810
        %834 = vmatprep.subr.mxu0 0.0
        %835 = vmatpush1.msra.mxu0 %v811
        %836 = vmatprep.subr.mxu0 0.0
        %837 = vmatpush1.msra.mxu0 %v812
        %838 = vmatprep.subr.mxu0 0.0
        %839 = vmatpush1.msra.mxu0 %v813
        %840 = vmatprep.subr.mxu0 0.0
        %841 = vmatpush1.msra.mxu0 %v814
        %842 = vmatprep.subr.mxu0 0.0
        %843 = vmatpush1.msra.mxu0 %v815
        %844 = vmatprep.subr.mxu0 0.0
        %845 = vmatpush1.msra.mxu0 %v816
        %846 = vmatprep.subr.mxu0 0.0
        %847 = vmatpush1.msra.mxu0 %v817
        %848 = vmatprep.subr.mxu0 0.0
        %849 = vmatpush1.msra.mxu0 %v818
        %850 = vmatprep.subr.mxu0 0.0
        %851 = vmatpush1.msra.mxu0 %v819
        %852 = vmatprep.subr.mxu0 0.0
        %853 = vmatpush1.msra.mxu0 0.0
        %854 = vmatprep.subr.mxu0 0.0
        %855 = vmatpush1.msra.mxu0 0.0
        %856 = vmatprep.subr.mxu0 0.0
        %857 = vmatpush1.msra.mxu0 0.0
        %858 = vmatprep.subr.mxu0 0.0
        %859 = vmatpush1.msra.mxu0 0.0
        %860 = vmatprep.subr.mxu0 0.0
        %861 = vmatpush1.msra.mxu0 0.0
        %862 = vmatprep.subr.mxu0 0.0
        %863 = vmatpush1.msra.mxu0 0.0
        %864 = vmatprep.subr.mxu0 0.0
        %865 = vmatpush1.msra.mxu0 0.0
        %866 = vmatprep.subr.mxu0 0.0
        %867 = vmatpush1.msra.mxu0 0.0
        %868 = vmatprep.subr.mxu0 0.0
        %869 = vmatpush1.msra.mxu0 0.0
        %870 = vmatprep.subr.mxu0 0.0
        %871 = vmatpush1.msra.mxu0 0.0
        %872 = vmatprep.subr.mxu0 0.0
        %873 = vmatpush1.msra.mxu0 0.0
        %874 = vmatprep.subr.mxu0 0.0
        %875 = vmatpush1.msra.mxu0 0.0
        %876 = vmatprep.subr.mxu0 0.0
        %877 = vmatpush1.msra.mxu0 0.0
        %878 = vmatprep.subr.mxu0 0.0
        %879 = vmatpush1.msra.mxu0 0.0
        %880 = vmatprep.subr.mxu0 0.0
        %881 = vmatpush1.msra.mxu0 0.0
        %882 = vmatprep.subr.mxu0 0.0
        %883 = vmatpush1.msra.mxu0 0.0
        %884 = vmatprep.mubr.f32.mxu0 0.0
        %885 = vmatmul.mubr.f32.gmra.mrb[0].mxu0 %v801
        %v886 = vpop.f32.mrb[0].mxu0
        %v887 = vadd.f32 0.0, %v886
        %v888 = vpop.f32.mrb[0].mxu0
        %889 = vmatprep.mubr.f32.mxu0 0.0
        %890 = vmatmul.mubr.f32.gmra.mrb[0].mxu0 %v802
        %v891 = vpop.f32.mrb[0].mxu0
        %v892 = vadd.f32 0.0, %v891
        %v893 = vpop.f32.mrb[0].mxu0
        %894 = vdwg.mxu0
        %v895 = vadd.f32 %v793, %v887
        %v896 = vadd.f32 %v798, %v892
        %v897 = vld [vmem:[%s273] sm:$0xff]
        %v898 = vld [vmem:[%s273 + $0x8] sm:$0xff]
        %v899 = vld [vmem:[#allocation10] sm:$0xff]
        %v900 = vld [vmem:[#allocation10 + $0x8] sm:$0xff]
        %v901 = vld [vmem:[#allocation10 + $0x10] sm:$0xff]
        %v902 = vld [vmem:[#allocation10 + $0x18] sm:$0xff]
        %v903 = vld [vmem:[#allocation10 + $0x20] sm:$0xff]
        %v904 = vld [vmem:[#allocation10 + $0x28] sm:$0xff]
        %v905 = vld [vmem:[#allocation10 + $0x30] sm:$0xff]
        %v906 = vld [vmem:[#allocation10 + $0x38] sm:$0xff]
        %v908 = vsel %vm319, %v897, 0
        %v911 = vsel %vm319, %v898, 0
        %913 = vmatprep.subr.mxu0 0.0
        %914 = vmatpush1.msra.mxu0 %v899
        %915 = vmatprep.subr.mxu0 0.0
        %916 = vmatpush1.msra.mxu0 %v900
        %917 = vmatprep.subr.mxu0 0.0
        %918 = vmatpush1.msra.mxu0 %v901
        %919 = vmatprep.subr.mxu0 0.0
        %920 = vmatpush1.msra.mxu0 %v902
        %921 = vmatprep.subr.mxu0 0.0
        %922 = vmatpush1.msra.mxu0 %v903
        %923 = vmatprep.subr.mxu0 0.0
        %924 = vmatpush1.msra.mxu0 %v904
        %925 = vmatprep.subr.mxu0 0.0
        %926 = vmatpush1.msra.mxu0 %v905
        %927 = vmatprep.subr.mxu0 0.0
        %928 = vmatpush1.msra.mxu0 %v906
        %929 = vmatprep.subr.mxu0 0.0
        %930 = vmatpush1.msra.mxu0 0.0
        %931 = vmatprep.subr.mxu0 0.0
        %932 = vmatpush1.msra.mxu0 0.0
        %933 = vmatprep.subr.mxu0 0.0
        %934 = vmatpush1.msra.mxu0 0.0
        %935 = vmatprep.subr.mxu0 0.0
        %936 = vmatpush1.msra.mxu0 0.0
        %937 = vmatprep.subr.mxu0 0.0
        %938 = vmatpush1.msra.mxu0 0.0
        %939 = vmatprep.subr.mxu0 0.0
        %940 = vmatpush1.msra.mxu0 0.0
        %941 = vmatprep.subr.mxu0 0.0
        %942 = vmatpush1.msra.mxu0 0.0
        %943 = vmatprep.subr.mxu0 0.0
        %944 = vmatpush1.msra.mxu0 0.0
        %945 = vmatprep.subr.mxu0 0.0
        %946 = vmatpush1.msra.mxu0 0.0
        %947 = vmatprep.subr.mxu0 0.0
        %948 = vmatpush1.msra.mxu0 0.0
        %949 = vmatprep.subr.mxu0 0.0
        %950 = vmatpush1.msra.mxu0 0.0
        %951 = vmatprep.subr.mxu0 0.0
        %952 = vmatpush1.msra.mxu0 0.0
        %953 = vmatprep.subr.mxu0 0.0
        %954 = vmatpush1.msra.mxu0 0.0
        %955 = vmatprep.subr.mxu0 0.0
        %956 = vmatpush1.msra.mxu0 0.0
        %957 = vmatprep.subr.mxu0 0.0
        %958 = vmatpush1.msra.mxu0 0.0
        %959 = vmatprep.subr.mxu0 0.0
        %960 = vmatpush1.msra.mxu0 0.0
        %961 = vmatprep.subr.mxu0 0.0
        %962 = vmatpush1.msra.mxu0 0.0
        %963 = vmatprep.subr.mxu0 0.0
        %964 = vmatpush1.msra.mxu0 0.0
        %965 = vmatprep.subr.mxu0 0.0
        %966 = vmatpush1.msra.mxu0 0.0
        %967 = vmatprep.subr.mxu0 0.0
        %968 = vmatpush1.msra.mxu0 0.0
        %969 = vmatprep.subr.mxu0 0.0
        %970 = vmatpush1.msra.mxu0 0.0
        %971 = vmatprep.subr.mxu0 0.0
        %972 = vmatpush1.msra.mxu0 0.0
        %973 = vmatprep.subr.mxu0 0.0
        %974 = vmatpush1.msra.mxu0 0.0
        %975 = vmatprep.subr.mxu0 0.0
        %976 = vmatpush1.msra.mxu0 0.0
        %977 = vmatprep.mubr.f32.mxu0 0.0
        %978 = vmatmul.mubr.f32.gmra.mrb[0].mxu0 %v908
        %v979 = vpop.f32.mrb[0].mxu0
        %v980 = vadd.f32 0.0, %v979
        %v981 = vpop.f32.mrb[0].mxu0
        %982 = vmatprep.mubr.f32.mxu0 0.0
        %983 = vmatmul.mubr.f32.gmra.mrb[0].mxu0 %v911
        %v984 = vpop.f32.mrb[0].mxu0
        %v985 = vadd.f32 0.0, %v984
        %v986 = vpop.f32.mrb[0].mxu0
        %987 = vdwg.mxu0
        %v988 = vadd.f32 %v895, %v980
        %v989 = vadd.f32 %v896, %v985
        %v990 = vld [vmem:[%s5] sm:$0x1]
        %v992 = vlaneseq
        %v993 = vshrl.u32 %v992, 7
        %v994 = vsub.s32 0, %v993
        %v995 = vrot.slane %v990, %v994
        %v997 = vadd.f32 %v988, %v995
        %v998 = vadd.f32 %v989, %v995
        %v999 = vmax.f32 %v997, 0.0
        %v1000 = vmax.f32 %v998, 0.0
        %1001 = vst [vmem:[%s313] sm:$0xff] %v999
        %1002 = vst [vmem:[%s313 + $0x8] sm:$0xff] %v1000
        %s1003 = sand.u32 %s164, 1
        %s1004 = scalar_lea.sflag [#allocation6], %s1003
        %s1005 = sand.u32 %s164, 1
        %s1006 = smul.addr %s1005, 16
        %s1007 = scalar_lea.vmem [#allocation12], %s1006
        // Predicated region
        $region61: #{tpu_custom_call.1} parent=43 // pred_check
          %p1008 = pneg %p174
        $region62: #{tpu_custom_call.1} parent=43 // pred_check_branch
          %1010 = sbr.rel (%p1008) target = $region64
        $region63: #{tpu_custom_call.1} parent=43 // pred_region
          %s1012 = ssub.s32 256, 256
          %1013 = vsyncadd %s1004, %s1012
          %s1014 = smul.addr %s25, 2
          %s1015 = smul.addr %s1014, 128
          %s1016 = scalar_lea.hbm %s6, %s1015
          %s1017 = sshll.u32 %s1007, 4
          %s1018 = int_to_ptr.vmem [resolvable:$true] %s1017
          %1023 = dma.vmem_to_hbm [thread:$0]  %s1018, 256, %s1016, %s1004, 128, 128, 8
        $region64: #{tpu_custom_call.1} parent=43 // pred_fallthru
          _
      $region44: #{tpu_custom_call.1} parent=5 // pred_fallthru
        _
      %p1024 = scmp.le.s32.totalorder 2, %s20
      // Predicated region
      $region65: #{tpu_custom_call.1} parent=5 // pred_check
        %p1025 = pneg %p1024
      $region66: #{tpu_custom_call.1} parent=5 // pred_check_branch
        %1027 = sbr.rel (%p1025) target = $region68
      $region67: #{tpu_custom_call.1} parent=5 // pred_region
        %s1028 = ssub.s32 %s20, 2
        // Predicated region
        $region69: #{tpu_custom_call.1} parent=67 // pred_check
          %p1029 = pneg %p180
        $region70: #{tpu_custom_call.1} parent=67 // pred_check_branch
          %1031 = sbr.rel (%p1029) target = $region72
        $region71: #{tpu_custom_call.1} parent=67 // pred_region
          %s1032 = sand.u32 %s165, 1
          %s1033 = scalar_lea.sflag [#allocation6], %s1032
          %s1034 = sand.u32 %s165, 1
          %s1035 = smul.addr %s1034, 16
          %s1036 = scalar_lea.vmem [#allocation12], %s1035
          %1037 = dma.done %s1033, 256
        $region72: #{tpu_custom_call.1} parent=67 // pred_fallthru
          _
      $region68: #{tpu_custom_call.1} parent=5 // pred_fallthru
        _
    $region6: #{tpu_custom_call.1} parent=1 // loop_footer
      %s24 = sadd.s32 1, %s20
    $region7: #{tpu_custom_call.1} parent=1 // loop_footer_branch
      %19 = sbr.rel target = $region3
    $region8: #{tpu_custom_call.1} parent=1 // loop_exit
      _
    %1038 = vsyncpa [#allocation5], 1
    %s1039 = scalar_lea.sflag [#allocation5], 1
    %1040 = vsyncpa %s1039, 1
    %1041 = vsyncpa [#allocation8], 1
    %1042 = vsyncpa [#allocation11], 1
    %1043 = vsyncpa [#allocation6], 1
    %s1044 = scalar_lea.sflag [#allocation6], 1
    %1045 = vsyncpa %s1044, 1

</llo_original>
